<compile_context>
chip_gen: v5e
topology: v5e:2x2
jax: 0.10.0
libtpu: 0.0.40
codegen_flags: <defaults>
</compile_context>

<pallas_src>
import functools

import jax
import jax.numpy as jnp
from jax.experimental import pallas as pl
from jax.experimental.pallas import tpu as pltpu

SIGMA = 10.0
BETA = 8.0 / 3.0
RHO = 28.0

_LANES = 128            # vreg lane width
_TILE_M = 1024          # rows of 128 lanes per block -> 1.5 MiB/block (f32, 3 comps)
# Only use Pallas when there are >= ~4 grid steps to pipeline; below that the
# XLA-fused elementwise path already sits on the HBM roofline.
_PALLAS_MIN_ELEMS = 4 * _TILE_M * _LANES


def _lorenz_kernel(y_ref, o_ref, *, sigma, beta, rho):
    # y_ref / o_ref: (3, tile_m, 128) f32 blocks in VMEM.
    # Per-component loads/stores: no jnp.stack materialization, shorter vreg
    # live ranges, and each (tile_m, 128) slab stays (8,128)-aligned so stores
    # are unmasked full-vreg vst.
    x = y_ref[0]
    y = y_ref[1]
    z = y_ref[2]
    o_ref[0] = sigma * (y - x)
    o_ref[1] = x * (rho - z) - y
    o_ref[2] = x * y - beta * z


def _lorenz_pallas_2d(y2d, sigma, beta, rho):
    """y2d: (3, N) f32 -> (3, N) f32 via a tiled, pipelined Pallas kernel."""
    n = y2d.shape[1]
    m = pl.cdiv(n, _LANES)          # number of 128-lane rows
    n_pad = m * _LANES

    if n_pad != n:
        # Lane padding only (<= 127 elements); skipped entirely when N % 128 == 0.
        y2d = jnp.pad(y2d, ((0, 0), (0, n_pad - n)))
    y3d = y2d.reshape(3, m, _LANES)  # contiguous reshape: metadata-only

    # Full-array block when small (block dim == array dim is always legal);
    # otherwise a multiple-of-8 tile with a Pallas-masked partial last block.
    tile_m = m if m <= _TILE_M else _TILE_M
    grid = (pl.cdiv(m, tile_m),)

    kernel = functools.partial(_lorenz_kernel, sigma=sigma, beta=beta, rho=rho)
    out = pl.pallas_call(
        kernel,
        out_shape=jax.ShapeDtypeStruct((3, m, _LANES), jnp.float32),
        grid_spec=pltpu.PrefetchScalarGridSpec(
            num_scalar_prefetch=0,
            grid=grid,
            in_specs=[pl.BlockSpec((3, tile_m, _LANES), lambda i: (0, i, 0))],
            out_specs=pl.BlockSpec((3, tile_m, _LANES), lambda i: (0, i, 0)),
        ),
        compiler_params=pltpu.CompilerParams(
            dimension_semantics=("parallel",),
        ),
    )(y3d)

    out2d = out.reshape(3, n_pad)
    return out2d[:, :n] if n_pad != n else out2d


def lorenz_forward(t, y, *, sigma=SIGMA, beta=BETA, rho=RHO, force_pallas=False):
    """Pallas/JAX equivalent of Lorenz.forward(t, y).

    `t` is accepted for API parity but unused (as in the reference).
    `y` may be shape (3,), (3, N), or (3, ...); output matches `y`'s shape.
    Note: inputs are computed in float32 (float64 inputs are downcast).
    """
    del t  # unused by the Lorenz RHS
    y = jnp.asarray(y, dtype=jnp.float32)
    if y.shape[0] != 3:
        raise ValueError(f"Lorenz state must have leading dim 3, got {y.shape}")
    y2d = y.reshape(3, -1)
    n = y2d.shape[1]

    if force_pallas or n >= _PALLAS_MIN_ELEMS:
        out2d = _lorenz_pallas_2d(y2d, float(sigma), float(beta), float(rho))
    else:
        # Tiny state (e.g. the canonical (3,) ODE RHS): a kernel launch is
        # pure overhead; let XLA fuse the handful of flops.
        x, yy, z = y2d[0], y2d[1], y2d[2]
        out2d = jnp.stack(
            [sigma * (yy - x), x * (rho - z) - yy, x * yy - beta * z]
        )
    return out2d.reshape(y.shape)


def _lorenz_ref(y, sigma=SIGMA, beta=BETA, rho=RHO):
    x, yy, z = y[0], y[1], y[2]
    return jnp.stack(
        [sigma * (yy - x), x * (rho - z) - yy, x * yy - beta * z]
    )


if __name__ == "__main__":
    t0 = jnp.float32(0.0)
    key = jax.random.PRNGKey(0)
    k0, k1, k2 = jax.random.split(key, 3)

    # 1) Canonical ODE state: shape (3,) — dispatched to the fused-jnp path.
    y0 = jax.random.normal(k0, (3,), dtype=jnp.float32)
    d0 = jax.block_until_ready(lorenz_forward(t0, y0))
    assert d0.shape == (3,)
    assert jnp.allclose(d0, _lorenz_ref(y0), atol=1e-5, rtol=1e-5)

    # 2) Small batch, Pallas path forced — exercises the kernel (single block,
    #    N % 128 == 0 so no pad / no slice).
    yb = jax.random.normal(k1, (3, 2048), dtype=jnp.float32)
    db = jax.block_until_ready(lorenz_forward(t0, yb, force_pallas=True))
    assert db.shape == yb.shape
    assert jnp.allclose(db, _lorenz_ref(yb), atol=1e-4, rtol=1e-5)

    # 3) Ragged batch (N not a multiple of 128), Pallas path forced — checks
    #    the lane-padding + final slice path.
    yr = jax.random.normal(k2, (3, 300), dtype=jnp.float32)
    dr = jax.block_until_ready(lorenz_forward(t0, yr, force_pallas=True))
    assert dr.shape == yr.shape
    assert jnp.allclose(dr, _lorenz_ref(yr), atol=1e-4, rtol=1e-5)

    print("KERNEL_OK")
</pallas_src>

<mosaic_0001>
module attributes {stable_mosaic.version = 11 : i64} {
  func.func @_lorenz_kernel(%arg0: i32, %arg1: memref<3x16x128xf32, #tpu.memory_space<vmem>>, %arg2: memref<3x16x128xf32, #tpu.memory_space<vmem>>) attributes {dimension_semantics = [#tpu.dimension_semantics<parallel>], iteration_bounds = array<i64: 1>, scalar_prefetch = 0 : i64, scratch_operands = 0 : i64, tpu.core_type = #tpu.core_type<tc>, window_params = [{transform_indices = @transform_0, window_bounds = array<i64: 3, 16, 128>}, {transform_indices = @transform_1, window_bounds = array<i64: 3, 16, 128>}]} {
    %c0 = arith.constant 0 : index
    %c0_0 = arith.constant 0 : index
    %c0_1 = arith.constant 0 : index
    %0 = vector.load %arg1[%c0, %c0_0, %c0_1] : memref<3x16x128xf32, #tpu.memory_space<vmem>>, vector<1x16x128xf32>
    %1 = vector.shape_cast %0 : vector<1x16x128xf32> to vector<16x128xf32>
    %c1 = arith.constant 1 : index
    %c0_2 = arith.constant 0 : index
    %c0_3 = arith.constant 0 : index
    %2 = vector.load %arg1[%c1, %c0_2, %c0_3] : memref<3x16x128xf32, #tpu.memory_space<vmem>>, vector<1x16x128xf32>
    %3 = vector.shape_cast %2 : vector<1x16x128xf32> to vector<16x128xf32>
    %c2 = arith.constant 2 : index
    %c0_4 = arith.constant 0 : index
    %c0_5 = arith.constant 0 : index
    %4 = vector.load %arg1[%c2, %c0_4, %c0_5] : memref<3x16x128xf32, #tpu.memory_space<vmem>>, vector<1x16x128xf32>
    %5 = vector.shape_cast %4 : vector<1x16x128xf32> to vector<16x128xf32>
    %6 = arith.subf %3, %1 : vector<16x128xf32>
    %cst = arith.constant 1.000000e+01 : f32
    %7 = vector.broadcast %cst : f32 to vector<16x128xf32>
    %8 = arith.mulf %7, %6 : vector<16x128xf32>
    %c0_6 = arith.constant 0 : index
    %c0_7 = arith.constant 0 : index
    %c0_8 = arith.constant 0 : index
    %9 = vector.load %arg2[%c0_6, %c0_7, %c0_8] : memref<3x16x128xf32, #tpu.memory_space<vmem>>, vector<1x16x128xf32>
    %10 = vector.shape_cast %9 : vector<1x16x128xf32> to vector<16x128xf32>
    %11 = vector.shape_cast %8 : vector<16x128xf32> to vector<1x16x128xf32>
    tpu.vector_store %arg2[%c0_6, %c0_7, %c0_8], %11 {strides = array<i32>} : memref<3x16x128xf32, #tpu.memory_space<vmem>>, vector<1x16x128xf32>,
    %cst_9 = arith.constant 2.800000e+01 : f32
    %12 = vector.broadcast %cst_9 : f32 to vector<16x128xf32>
    %13 = arith.subf %12, %5 : vector<16x128xf32>
    %14 = arith.mulf %1, %13 : vector<16x128xf32>
    %15 = arith.subf %14, %3 : vector<16x128xf32>
    %c1_10 = arith.constant 1 : index
    %c0_11 = arith.constant 0 : index
    %c0_12 = arith.constant 0 : index
    %16 = vector.load %arg2[%c1_10, %c0_11, %c0_12] : memref<3x16x128xf32, #tpu.memory_space<vmem>>, vector<1x16x128xf32>
    %17 = vector.shape_cast %16 : vector<1x16x128xf32> to vector<16x128xf32>
    %18 = vector.shape_cast %15 : vector<16x128xf32> to vector<1x16x128xf32>
    tpu.vector_store %arg2[%c1_10, %c0_11, %c0_12], %18 {strides = array<i32>} : memref<3x16x128xf32, #tpu.memory_space<vmem>>, vector<1x16x128xf32>,
    %19 = arith.mulf %1, %3 : vector<16x128xf32>
    %cst_13 = arith.constant 2.66666675 : f32
    %20 = vector.broadcast %cst_13 : f32 to vector<16x128xf32>
    %21 = arith.mulf %20, %5 : vector<16x128xf32>
    %22 = arith.subf %19, %21 : vector<16x128xf32>
    %c2_14 = arith.constant 2 : index
    %c0_15 = arith.constant 0 : index
    %c0_16 = arith.constant 0 : index
    %23 = vector.load %arg2[%c2_14, %c0_15, %c0_16] : memref<3x16x128xf32, #tpu.memory_space<vmem>>, vector<1x16x128xf32>
    %24 = vector.shape_cast %23 : vector<1x16x128xf32> to vector<16x128xf32>
    %25 = vector.shape_cast %22 : vector<16x128xf32> to vector<1x16x128xf32>
    tpu.vector_store %arg2[%c2_14, %c0_15, %c0_16], %25 {strides = array<i32>} : memref<3x16x128xf32, #tpu.memory_space<vmem>>, vector<1x16x128xf32>,
    return
  }
  func.func @transform_0(%arg0: i32) -> (i32, i32, i32) {
    %c0_i32 = arith.constant 0 : i32
    %c0_i32_0 = arith.constant 0 : i32
    %c0_i32_1 = arith.constant 0 : i32
    return %c0_i32, %arg0, %c0_i32_0 : i32, i32, i32
  }
  func.func @transform_1(%arg0: i32) -> (i32, i32, i32) {
    %c0_i32 = arith.constant 0 : i32
    %c0_i32_0 = arith.constant 0 : i32
    %c0_i32_1 = arith.constant 0 : i32
    return %c0_i32, %arg0, %c0_i32_0 : i32, i32, i32
  }
}

</mosaic_0001>

<llo_original>
// kernel: tpu_custom_call.1
$region0: #{tpu_custom_call.1}
  #allocation0 [shape = 'u32[]', space=smem, size = 0x4, offset = 0x4, fixed_abs, tag = 'smem constant byte address 0x4 - core index']
  #allocation1 [shape = 'u32[72,128]{1,0:T(1,128)}', space=vmem, size = 0x9000, scoped, tag = 'internal scratch']
  %s0 = inlined_call_operand.hbm [shape: f32[3,16,128], index: 0, kind: input, shape index: {}]
  %s1 = inlined_call_operand.hbm [shape: f32[3,16,128], index: 1, kind: output, shape index: {}]
  %s2 = sld [smem:[#allocation0]]
  $region18: #{tpu_custom_call.1} parent=0
    _
  %s4 = ssub.s32 1, %s2
  %s5 = scalar_select 0, %s4, %s2
  $region1: #{tpu_custom_call.1} parent=0
    #allocation2 [shape = 'u8[24576]{0}', space=vmem, size = 0x6000, scoped, tag = 'input window, operand 0, single buffered']
    #allocation3 [shape = 's32[1]{0}', space=sflag, size = 0x4, scoped, tag = 'scoped memory for tpu_custom_call.1']
    #allocation4 [shape = 's32[1]{0}', space=sflag, size = 0x4, scoped, tag = 'scoped memory for tpu_custom_call.1']
    #allocation5 [shape = 'u8[24576]{0}', space=vmem, size = 0x6000, scoped, tag = 'output window, operand 0, single buffered']
    %6 = vsyncpa [#allocation3], 0
    %7 = vsyncpa [#allocation4], 0
    // Predicated region
    $region2: #{tpu_custom_call.1} parent=1 // pred_check
      _
    $region3: #{tpu_custom_call.1} parent=1 // pred_check_branch
      %9 = sbr.rel (0) target = $region5
    $region4: #{tpu_custom_call.1} parent=1 // pred_region
      %11 = vsyncadd [#allocation3], 0
      %s12 = sshll.u32 %s0, 4
      %s13 = int_to_ptr.hbm [resolvable:$true] %s12
      %s14 = sshll.u32 [#allocation2], 4
      %s15 = int_to_ptr.vmem [resolvable:$true] %s14
      %20 = dma.hbm_to_vmem [thread:$0]  %s13, 768, %s15, [#allocation3], 128, 128, 8
    $region5: #{tpu_custom_call.1} parent=1 // pred_fallthru
      _
    // Predicated region
    $region6: #{tpu_custom_call.1} parent=1 // pred_check
      _
    $region7: #{tpu_custom_call.1} parent=1 // pred_check_branch
      %22 = sbr.rel (0) target = $region9
    $region8: #{tpu_custom_call.1} parent=1 // pred_region
      %24 = dma.done [#allocation3], 768
    $region9: #{tpu_custom_call.1} parent=1 // pred_fallthru
      _
    %v25 = vld [vmem:[#allocation2] sm:$0xff]
    %v26 = vld [vmem:[#allocation2 + $0x8] sm:$0xff]
    %s27 = scalar_lea.vmem [#allocation2], 16
    %v28 = vld [vmem:[%s27] sm:$0xff]
    %v29 = vld [vmem:[%s27 + $0x8] sm:$0xff]
    %s30 = scalar_lea.vmem [#allocation2], 32
    %v31 = vld [vmem:[%s30] sm:$0xff]
    %v32 = vld [vmem:[%s30 + $0x8] sm:$0xff]
    %v33 = vsub.f32 %v28, %v25
    %v34 = vsub.f32 %v29, %v26
    %v35 = vmul.f32 %v33, 10.0
    %v36 = vmul.f32 %v34, 10.0
    %37 = vst [vmem:[#allocation5] sm:$0xff] %v35
    %38 = vst [vmem:[#allocation5 + $0x8] sm:$0xff] %v36
    %v39 = vsub.f32 28.0, %v31
    %v40 = vsub.f32 28.0, %v32
    %v41 = vmul.f32 %v25, %v39
    %v42 = vmul.f32 %v26, %v40
    %v43 = vsub.f32 %v41, %v28
    %v44 = vsub.f32 %v42, %v29
    %s45 = scalar_lea.vmem [#allocation5], 16
    %46 = vst [vmem:[%s45] sm:$0xff] %v43
    %47 = vst [vmem:[%s45 + $0x8] sm:$0xff] %v44
    %v48 = vmul.f32 %v25, %v28
    %v49 = vmul.f32 %v26, %v29
    %v50 = vmul.f32 %v31, 2.6666667
    %v51 = vmul.f32 %v32, 2.6666667
    %v52 = vsub.f32 %v48, %v50
    %v53 = vsub.f32 %v49, %v51
    %s54 = scalar_lea.vmem [#allocation5], 32
    %55 = vst [vmem:[%s54] sm:$0xff] %v52
    %56 = vst [vmem:[%s54 + $0x8] sm:$0xff] %v53
    // Predicated region
    $region10: #{tpu_custom_call.1} parent=1 // pred_check
      _
    $region11: #{tpu_custom_call.1} parent=1 // pred_check_branch
      %58 = sbr.rel (0) target = $region13
    $region12: #{tpu_custom_call.1} parent=1 // pred_region
      %60 = vsyncadd [#allocation4], 0
      %s61 = sshll.u32 [#allocation5], 4
      %s62 = int_to_ptr.vmem [resolvable:$true] %s61
      %s63 = sshll.u32 %s1, 4
      %s64 = int_to_ptr.hbm [resolvable:$true] %s63
      %69 = dma.vmem_to_hbm [thread:$0]  %s62, 768, %s64, [#allocation4], 128, 128, 8
    $region13: #{tpu_custom_call.1} parent=1 // pred_fallthru
      _
    // Predicated region
    $region14: #{tpu_custom_call.1} parent=1 // pred_check
      _
    $region15: #{tpu_custom_call.1} parent=1 // pred_check_branch
      %71 = sbr.rel (0) target = $region17
    $region16: #{tpu_custom_call.1} parent=1 // pred_region
      %73 = dma.done [#allocation4], 768
    $region17: #{tpu_custom_call.1} parent=1 // pred_fallthru
      _
    %74 = vsyncpa [#allocation3], 1
    %75 = vsyncpa [#allocation4], 1

</llo_original>
